<compile_context>
chip_gen: v6e
topology: v6e:2x2x1
jax: 0.10.0
libtpu: 0.0.40
codegen_flags: <defaults>
</compile_context>

<pallas_src>
import jax
import jax.numpy as jnp
import numpy as np
from jax import lax
from jax.experimental import pallas as pl
from jax.experimental.pallas import tpu as pltpu

BN_EPS = 1e-5
_MAX_TL = 2048   # lane-tile cap; 512-2048 reaches ~85-86% of HBM roofline


def _vmem_config():
    """Return (buffer budget for tile sizing, scoped vmem_limit_bytes), generation-aware."""
    cap = 64 * 1024 * 1024
    try:
        cap = int(getattr(pltpu.get_tpu_info(), "vmem_capacity_bytes", cap)) or cap
    except Exception:
        pass
    if cap >= 128 * 1024 * 1024:                    # v5e / v6e: 128 MiB physical VMEM
        return 64 * 1024 * 1024, 96 * 1024 * 1024
    return 24 * 1024 * 1024, 32 * 1024 * 1024       # v7x (64 MiB) and unknown parts


def _choose_l_tile(l, c_in, c_out, vmem_budget):
    """Largest lane-dense L tile that fits the VMEM budget.

    Never falls back to a tiny exact divisor: non-dividing L is handled by masked
    tail tiles (pass 1) and masked OOB output stores (pass 2).
    """
    fixed = 8 * c_in * max(c_in, c_out) + (1 << 20)   # weight / gram blocks (x2 bufs) + slack
    per_col = 8 * (c_in + c_out)                      # double-buffered f32 x + out columns
    max_tl = (vmem_budget - fixed) // per_col
    max_tl = int(min(max(max_tl, 256), _MAX_TL))
    max_tl -= max_tl % 128
    if l <= max_tl:
        return l                                      # one full-L block (full-dim, no constraint)
    return max_tl                                     # large multiple-of-128 tile + masked tail


# ---------------------------------------------------------------------------
# Pass 1: shift-centered input statistics, accumulated in the VMEM-resident
# output block across the trailing ("arbitrary") sample / L-tile axes.
#   gram_ref <- sum (x-shift)(x-shift)^T   (C_in, C_in)
#   sum_ref  <- sum (x-shift)              (C_in, 1)
# Output blocks are indexed only by the small leading "parallel" group axis.
# ---------------------------------------------------------------------------
def _make_stats_kernel(l, tl, j_stride):
    tail = (l % tl) != 0

    def kernel(x_ref, shift_ref, gram_ref, sum_ref):
        s = pl.program_id(1)
        j = pl.program_id(2)

        @pl.when((s == 0) & (j == 0))
        def _():
            gram_ref[...] = jnp.zeros_like(gram_ref)
            sum_ref[...] = jnp.zeros_like(sum_ref)

        # Stats math stays in f32 regardless of the input dtype.
        xc = x_ref[...].astype(jnp.float32) - shift_ref[...]          # (C_in, tl)
        if tail:
            # Tail lanes of a partial input block are UNDEFINED -> mask them to zero.
            j_global = pl.program_id(0) * j_stride + j
            valid = l - j_global * tl                                  # >= tl for full tiles
            lane = lax.broadcasted_iota(jnp.int32, xc.shape, 1)
            xc = jnp.where(lane < valid, xc, 0.0)

        # Gram via MXU, contracting the lane axis of both operands.
        # TODO(synk): if C_in is large, check the Mosaic dump for a per-tile vxpose here
        #             and restructure to a transposed-matmul mode if the XLU binds.
        gram_ref[...] += lax.dot_general(
            xc, xc, (((1,), (1,)), ((), ())), preferred_element_type=jnp.float32)
        sum_ref[...] += jnp.sum(xc, axis=1, keepdims=True)

    return kernel


# ---------------------------------------------------------------------------
# Pass 2: fused 1x1 conv + BatchNorm + ReLU with BN folded into W_eff / b_eff.
#   out = max(W_eff @ x + b_eff, 0)
# MXU operands take w_ref's dtype (bf16 when enabled); accumulation / bias /
# ReLU stay in f32 (v5e has no bf16 VPU).
# ---------------------------------------------------------------------------
def _fused_conv_bn_relu_kernel(x_ref, w_ref, b_ref, o_ref):
    y = jnp.dot(w_ref[...], x_ref[...].astype(w_ref.dtype),
                preferred_element_type=jnp.float32)
    y = y + b_ref[...]                                     # (C_out, tl) + (C_out, 1)
    o_ref[...] = jnp.maximum(y, 0.0).astype(o_ref.dtype)


# ---------------------------------------------------------------------------
# Wrapper
# ---------------------------------------------------------------------------
def conv1d_block(x_ncl, weight_oc, bias_o, gamma_o, beta_o, *,
                 mxu_dtype=None, l_tile=None):
    """x_ncl: (N, C_in, L); weight (C_out, C_in); bias/gamma/beta (C_out,).
    Returns (N, C_out, L) matching Conv1d(k=1) + BatchNorm1d(train) + ReLU.
    mxu_dtype=jnp.bfloat16 casts the pass-2 matmul operands (f32 accumulation)."""
    n, c_in, l = x_ncl.shape
    c_out = weight_oc.shape[0]
    m = n * l
    compute_dtype = jnp.float32 if mxu_dtype is None else mxu_dtype

    vmem_budget, vmem_limit = _vmem_config()
    tl = int(min(l_tile, l)) if l_tile is not None else _choose_l_tile(l, c_in, c_out, vmem_budget)
    nl = (l + tl - 1) // tl                       # cdiv: tail tile is masked, never padded

    # Cheap per-channel shift (prefix mean of sample 0) to center the Gram and avoid
    # f32 catastrophic cancellation in cov_x = E[xx^T] - mean mean^T.
    k0 = min(l, 512)
    shift = jnp.mean(x_ncl[0, :, :k0].astype(jnp.float32), axis=1, keepdims=True)  # (C_in, 1)

    # Pass-1 megacore coverage (v7x): 2 "parallel" groups over samples when N is even,
    # else over L-tile chunks; each group accumulates its own partial, reduced in XLA.
    if n % 2 == 0:
        num_g, n_in, nl_in, s_stride, j_stride = 2, n // 2, nl, n // 2, 0
    elif nl % 2 == 0:
        num_g, n_in, nl_in, s_stride, j_stride = 2, n, nl // 2, 0, nl // 2
    else:
        num_g, n_in, nl_in, s_stride, j_stride = 1, n, nl, 0, 0

    # ---- pass 1: input statistics (reads X once, writes O(num_g * C_in^2) partials) ----
    gram_part, sum_part = pl.pallas_call(
        _make_stats_kernel(l, tl, j_stride),
        out_shape=(
            jax.ShapeDtypeStruct((num_g, c_in, c_in), jnp.float32),
            jax.ShapeDtypeStruct((num_g, c_in, 1), jnp.float32),
        ),
        grid_spec=pltpu.PrefetchScalarGridSpec(
            num_scalar_prefetch=0,
            grid=(num_g, n_in, nl_in),
            in_specs=[
                pl.BlockSpec((None, c_in, tl),
                             lambda g, s, j: (g * s_stride + s, 0, g * j_stride + j)),
                pl.BlockSpec((c_in, 1), lambda g, s, j: (0, 0)),
            ],
            out_specs=[
                pl.BlockSpec((None, c_in, c_in), lambda g, s, j: (g, 0, 0)),
                pl.BlockSpec((None, c_in, 1), lambda g, s, j: (g, 0, 0)),
            ],
        ),
        compiler_params=pltpu.CompilerParams(
            dimension_semantics=("parallel", "arbitrary", "arbitrary"),
            vmem_limit_bytes=vmem_limit),
    )(x_ncl, shift)

    # ---- tiny XLA glue: analytic batch stats of y, folded into effective W / b ----
    inv_m = 1.0 / float(m)
    sum_c = jnp.sum(sum_part, axis=0)[:, 0]                 # (C_in,)  sum of (x - shift)
    gram_c = jnp.sum(gram_part, axis=0)                     # (C_in, C_in)
    mean_c = sum_c * inv_m
    mean_x = mean_c + shift[:, 0]
    cov_x = gram_c * inv_m - jnp.outer(mean_c, mean_c)      # shift cancels -> well conditioned
    mean_y = weight_oc @ mean_x + bias_o                    # (C_out,)
    var_y = jnp.einsum("oc,cd,od->o", weight_oc, cov_x, weight_oc)
    var_y = jnp.maximum(var_y, 0.0)                         # guard residual cancellation
    scale = gamma_o * lax.rsqrt(var_y + BN_EPS)             # (C_out,)
    w_eff = (weight_oc * scale[:, None]).astype(compute_dtype)       # (C_out, C_in)
    b_eff = ((bias_o - mean_y) * scale + beta_o).reshape(c_out, 1).astype(jnp.float32)

    # ---- pass 2: fused conv + BN + ReLU, writes only the final output ----
    # OOB tail columns of the last L tile are masked on store (out_shape uses true L);
    # garbage input tail columns cannot contaminate valid columns (1x1 conv is columnwise).
    out = pl.pallas_call(
        _fused_conv_bn_relu_kernel,
        out_shape=jax.ShapeDtypeStruct((n, c_out, l), x_ncl.dtype),
        grid_spec=pltpu.PrefetchScalarGridSpec(
            num_scalar_prefetch=0,
            grid=(n, nl),
            in_specs=[
                pl.BlockSpec((None, c_in, tl), lambda i, j: (i, 0, j)),
                pl.BlockSpec((c_out, c_in), lambda i, j: (0, 0)),
                pl.BlockSpec((c_out, 1), lambda i, j: (0, 0)),
            ],
            out_specs=pl.BlockSpec((None, c_out, tl), lambda i, j: (i, 0, j)),
        ),
        compiler_params=pltpu.CompilerParams(
            dimension_semantics=("parallel", "parallel"),
            vmem_limit_bytes=vmem_limit),
    )(x_ncl, w_eff, b_eff)

    return out


# ---------------------------------------------------------------------------
# Pure-JAX reference (mirrors PyTorch: Conv1d(k=1) -> BatchNorm1d(train) -> ReLU)
# ---------------------------------------------------------------------------
def conv1d_block_ref(x_ncl, weight_oc, bias_o, gamma_o, beta_o):
    y = jnp.einsum("oc,ncl->nol", weight_oc, x_ncl) + bias_o[None, :, None]
    mean = jnp.mean(y, axis=(0, 2), keepdims=True)
    var = jnp.mean((y - mean) ** 2, axis=(0, 2), keepdims=True)   # biased, as in BN training
    y_hat = (y - mean) * lax.rsqrt(var + BN_EPS)
    out = y_hat * gamma_o[None, :, None] + beta_o[None, :, None]
    return jnp.maximum(out, 0.0)


if __name__ == "__main__":
    key = jax.random.PRNGKey(0)
    kx, kw, kb, kg, kbe, kx2 = jax.random.split(key, 6)

    # Config A: small shapes, exact-semantics path (f32 MXU operands).
    N, C_IN, C_OUT, L = 2, 4, 8, 16
    x = jax.random.normal(kx, (N, C_IN, L), dtype=jnp.float32)
    weight = jax.random.normal(kw, (C_OUT, C_IN), dtype=jnp.float32) * 0.5   # Conv1d w (O,C,1) squeezed
    bias = jax.random.normal(kb, (C_OUT,), dtype=jnp.float32) * 0.1
    gamma = 1.0 + 0.1 * jax.random.normal(kg, (C_OUT,), dtype=jnp.float32)
    beta = 0.1 * jax.random.normal(kbe, (C_OUT,), dtype=jnp.float32)

    out = jax.block_until_ready(conv1d_block(x, weight, bias, gamma, beta))
    ref = conv1d_block_ref(x, weight, bias, gamma, beta)
    assert out.shape == (N, C_OUT, L)
    np.testing.assert_allclose(np.asarray(out), np.asarray(ref), rtol=1e-4, atol=1e-4)

    # Config B: non-dividing L with a forced 128-lane tile -> exercises the masked tail
    # tile in pass 1, partial (masked) output stores in pass 2, and the L-split grid.
    N2, L2 = 1, 400
    x2 = jax.random.normal(kx2, (N2, C_IN, L2), dtype=jnp.float32)
    out2 = jax.block_until_ready(conv1d_block(x2, weight, bias, gamma, beta, l_tile=128))
    ref2 = conv1d_block_ref(x2, weight, bias, gamma, beta)
    assert out2.shape == (N2, C_OUT, L2)
    np.testing.assert_allclose(np.asarray(out2), np.asarray(ref2), rtol=1e-4, atol=1e-4)

    # Config C: bf16 MXU operands (f32 accumulation) - the production bandwidth path.
    out3 = jax.block_until_ready(conv1d_block(x, weight, bias, gamma, beta,
                                              mxu_dtype=jnp.bfloat16))
    np.testing.assert_allclose(np.asarray(out3), np.asarray(ref), rtol=5e-2, atol=5e-2)

    print("KERNEL_OK")
</pallas_src>

<mosaic_0001>
module attributes {stable_mosaic.version = 11 : i64} {
  func.func @kernel(%arg0: i32, %arg1: i32, %arg2: i32, %arg3: memref<1x4x16xf32, #tpu.memory_space<vmem>>, %arg4: memref<4x1xf32, #tpu.memory_space<vmem>>, %arg5: memref<1x4x4xf32, #tpu.memory_space<vmem>>, %arg6: memref<1x4x1xf32, #tpu.memory_space<vmem>>) attributes {dimension_semantics = [#tpu.dimension_semantics<parallel>, #tpu.dimension_semantics<arbitrary>, #tpu.dimension_semantics<arbitrary>], iteration_bounds = array<i64: 2, 1, 1>, scalar_prefetch = 0 : i64, scratch_operands = 0 : i64, tpu.core_type = #tpu.core_type<tc>, window_params = [{transform_indices = @transform_0, window_bounds = array<i64: 1, 4, 16>}, {pipeline_mode = #tpu.pipeline_mode<synchronous>, transform_indices = @transform_1, window_bounds = array<i64: 4, 1>}, {transform_indices = @transform_2, window_bounds = array<i64: 1, 4, 4>}, {transform_indices = @transform_3, window_bounds = array<i64: 1, 4, 1>}]} {
    %c0_i32 = arith.constant 0 : i32
    %0 = arith.cmpi eq, %arg1, %c0_i32 : i32
    %c0_i32_0 = arith.constant 0 : i32
    %1 = arith.cmpi eq, %arg2, %c0_i32_0 : i32
    %2 = arith.andi %0, %1 : i1
    %3 = arith.extui %2 : i1 to i32
    %c0_i32_1 = arith.constant 0 : i32
    %4 = arith.cmpi ne, %3, %c0_i32_1 : i32
    scf.if %4 {
      %cst_19 = arith.constant 0.000000e+00 : f32
      %25 = vector.broadcast %cst_19 : f32 to vector<4x4xf32>
      %c0_20 = arith.constant 0 : index
      %c0_21 = arith.constant 0 : index
      %c0_22 = arith.constant 0 : index
      %26 = vector.load %arg5[%c0_20, %c0_21, %c0_22] : memref<1x4x4xf32, #tpu.memory_space<vmem>>, vector<1x4x4xf32>
      %27 = vector.shape_cast %26 : vector<1x4x4xf32> to vector<4x4xf32>
      %28 = vector.shape_cast %25 : vector<4x4xf32> to vector<1x4x4xf32>
      tpu.vector_store %arg5[%c0_20, %c0_21, %c0_22], %28 {strides = array<i32>} : memref<1x4x4xf32, #tpu.memory_space<vmem>>, vector<1x4x4xf32>,
      %cst_23 = arith.constant 0.000000e+00 : f32
      %29 = vector.broadcast %cst_23 : f32 to vector<4x1xf32>
      %c0_24 = arith.constant 0 : index
      %c0_25 = arith.constant 0 : index
      %c0_26 = arith.constant 0 : index
      %30 = vector.load %arg6[%c0_24, %c0_25, %c0_26] : memref<1x4x1xf32, #tpu.memory_space<vmem>>, vector<1x4x1xf32>
      %31 = vector.shape_cast %30 : vector<1x4x1xf32> to vector<4x1xf32>
      %32 = vector.shape_cast %29 : vector<4x1xf32> to vector<1x4x1xf32>
      tpu.vector_store %arg6[%c0_24, %c0_25, %c0_26], %32 {strides = array<i32>} : memref<1x4x1xf32, #tpu.memory_space<vmem>>, vector<1x4x1xf32>,
    } else {
    }
    %c0 = arith.constant 0 : index
    %c0_2 = arith.constant 0 : index
    %c0_3 = arith.constant 0 : index
    %5 = vector.load %arg3[%c0, %c0_2, %c0_3] : memref<1x4x16xf32, #tpu.memory_space<vmem>>, vector<1x4x16xf32>
    %6 = vector.shape_cast %5 : vector<1x4x16xf32> to vector<4x16xf32>
    %c0_4 = arith.constant 0 : index
    %c0_5 = arith.constant 0 : index
    %7 = vector.load %arg4[%c0_4, %c0_5] : memref<4x1xf32, #tpu.memory_space<vmem>>, vector<4x1xf32>
    %8 = vector.broadcast %7 : vector<4x1xf32> to vector<4x16xf32>
    %9 = arith.subf %6, %8 : vector<4x16xf32>
    %c0_6 = arith.constant 0 : index
    %c0_7 = arith.constant 0 : index
    %c0_8 = arith.constant 0 : index
    %10 = vector.load %arg5[%c0_6, %c0_7, %c0_8] : memref<1x4x4xf32, #tpu.memory_space<vmem>>, vector<1x4x4xf32>
    %11 = vector.shape_cast %10 : vector<1x4x4xf32> to vector<4x4xf32>
    %cst = arith.constant dense<0.000000e+00> : vector<4x4xf32>
    %12 = tpu.matmul %9, %9, %cst {dimension_numbers = #tpu.dot_dimension_numbers<[1], [1], [0], [0], [0, 0, 1, 0], [], []>} : vector<4x16xf32>, vector<4x16xf32>, vector<4x4xf32> -> vector<4x4xf32>
    %13 = arith.addf %11, %12 : vector<4x4xf32>
    %c0_9 = arith.constant 0 : index
    %c0_10 = arith.constant 0 : index
    %c0_11 = arith.constant 0 : index
    %14 = vector.load %arg5[%c0_9, %c0_10, %c0_11] : memref<1x4x4xf32, #tpu.memory_space<vmem>>, vector<1x4x4xf32>
    %15 = vector.shape_cast %14 : vector<1x4x4xf32> to vector<4x4xf32>
    %16 = vector.shape_cast %13 : vector<4x4xf32> to vector<1x4x4xf32>
    tpu.vector_store %arg5[%c0_9, %c0_10, %c0_11], %16 {strides = array<i32>} : memref<1x4x4xf32, #tpu.memory_space<vmem>>, vector<1x4x4xf32>,
    %c0_12 = arith.constant 0 : index
    %c0_13 = arith.constant 0 : index
    %c0_14 = arith.constant 0 : index
    %17 = vector.load %arg6[%c0_12, %c0_13, %c0_14] : memref<1x4x1xf32, #tpu.memory_space<vmem>>, vector<1x4x1xf32>
    %18 = vector.shape_cast %17 : vector<1x4x1xf32> to vector<4x1xf32>
    %cst_15 = arith.constant dense<0.000000e+00> : vector<4xf32>
    %19 = vector.multi_reduction <add>, %9, %cst_15 [1] : vector<4x16xf32> to vector<4xf32>
    %20 = vector.shape_cast %19 : vector<4xf32> to vector<4x1xf32>
    %21 = arith.addf %18, %20 : vector<4x1xf32>
    %c0_16 = arith.constant 0 : index
    %c0_17 = arith.constant 0 : index
    %c0_18 = arith.constant 0 : index
    %22 = vector.load %arg6[%c0_16, %c0_17, %c0_18] : memref<1x4x1xf32, #tpu.memory_space<vmem>>, vector<1x4x1xf32>
    %23 = vector.shape_cast %22 : vector<1x4x1xf32> to vector<4x1xf32>
    %24 = vector.shape_cast %21 : vector<4x1xf32> to vector<1x4x1xf32>
    tpu.vector_store %arg6[%c0_16, %c0_17, %c0_18], %24 {strides = array<i32>} : memref<1x4x1xf32, #tpu.memory_space<vmem>>, vector<1x4x1xf32>,
    return
  }
  func.func @transform_0(%arg0: i32, %arg1: i32, %arg2: i32) -> (i32, i32, i32) {
    %c1_i32 = arith.constant 1 : i32
    %0 = arith.muli %arg0, %c1_i32 : i32
    %1 = arith.addi %0, %arg1 : i32
    %c0_i32 = arith.constant 0 : i32
    %2 = arith.muli %arg0, %c0_i32 : i32
    %3 = arith.addi %2, %arg2 : i32
    %c0_i32_0 = arith.constant 0 : i32
    %c0_i32_1 = arith.constant 0 : i32
    return %1, %c0_i32_0, %3 : i32, i32, i32
  }
  func.func @transform_1(%arg0: i32, %arg1: i32, %arg2: i32) -> (i32, i32) {
    %c0_i32 = arith.constant 0 : i32
    %c0_i32_0 = arith.constant 0 : i32
    %c0_i32_1 = arith.constant 0 : i32
    return %c0_i32, %c0_i32_0 : i32, i32
  }
  func.func @transform_2(%arg0: i32, %arg1: i32, %arg2: i32) -> (i32, i32, i32) {
    %c0_i32 = arith.constant 0 : i32
    %c0_i32_0 = arith.constant 0 : i32
    %c0_i32_1 = arith.constant 0 : i32
    return %arg0, %c0_i32, %c0_i32_0 : i32, i32, i32
  }
  func.func @transform_3(%arg0: i32, %arg1: i32, %arg2: i32) -> (i32, i32, i32) {
    %c0_i32 = arith.constant 0 : i32
    %c0_i32_0 = arith.constant 0 : i32
    %c0_i32_1 = arith.constant 0 : i32
    return %arg0, %c0_i32, %c0_i32_0 : i32, i32, i32
  }
}

</mosaic_0001>

<llo_original>
// kernel: tpu_custom_call.1
$region0: #{tpu_custom_call.1}
  #allocation0 [shape = 'u32[]', space=smem, size = 0x4, offset = 0x4, fixed_abs, tag = 'smem constant byte address 0x4 - core index']
  #allocation1 [shape = 'u32[144,128]{1,0:T(1,128)}', space=vmem, size = 0x12000, scoped, tag = 'internal scratch']
  %s0 = inlined_call_operand.hbm [shape: f32[2,4,16], index: 0, kind: input, shape index: {}]
  %s1 = inlined_call_operand.vmem [shape: f32[4,1], index: 1, kind: input, shape index: {}]
  %s2 = inlined_call_operand.hbm [shape: f32[2,4,4], index: 2, kind: output, shape index: {0}]
  %s3 = inlined_call_operand.vmem [shape: f32[2,4,1], index: 3, kind: output, shape index: {1}]
  %4 = xla_tuple %s2, %s3
  %s5 = sld [smem:[#allocation0]]
  $region57: #{tpu_custom_call.1} parent=0
    _
  %s7 = ssub.s32 1, %s5
  %s8 = scalar_select 0, %s7, %s5
  $region1: #{tpu_custom_call.1} parent=0
    #allocation2 [shape = 'u8[4096]{0}', space=vmem, size = 0x1000, scoped, tag = 'input window, operand 0']
    #allocation3 [shape = 's32[2]{0}', space=sflag, size = 0x8, scoped, tag = 'scoped memory for tpu_custom_call.1']
    #allocation4 [shape = 's32[2]{0}', space=sflag, size = 0x8, scoped, tag = 'scoped memory for tpu_custom_call.1']
    #allocation5 [shape = 'u8[4096]{0}', space=vmem, size = 0x1000, scoped, tag = 'output window, operand 0']
    %9 = vsyncpa [#allocation3], 0
    %s10 = scalar_lea.sflag [#allocation3], 1
    %11 = vsyncpa %s10, 0
    %12 = vsyncpa [#allocation4], 0
    %s13 = scalar_lea.sflag [#allocation4], 1
    %14 = vsyncpa %s13, 0
    loop: start=0, step=1, limit=4
    $region2: #{tpu_custom_call.1} parent=1 // loop_pre_header
      _
    $region3: #{tpu_custom_call.1} parent=1 // loop_header
      %s16 = sphi 0, %s20
      %p17 = scmp.ge.s32.totalorder %s16, 4
      %s23 = sphi 0, %s42
      %s24 = sphi 0, %s38
      %s25 = sphi 0, %s34
      %s26 = sphi 0, %s23
      %s27 = sphi 0, %s24
      %s28 = sphi 0, %s25
      %s29 = sphi 0, %s26
      %s30 = sphi 0, %s27
      %s31 = sphi 0, %s28
      %s49 = sphi 0, %s51
      %s52 = sphi 0, %s49
      %s53 = sphi 0, %s52
      %s69 = sphi 0, %s53
      %s73 = sphi 0, %s73
      %s75 = sphi 0, %s73
      %s76 = sphi 0, %s75
      %s90 = sphi 0, %s76
      %s96 = sphi 0, %s98
      %s99 = sphi 0, %s96
      %s100 = sphi 0, %s99
      %s116 = sphi 0, %s100
      %s122 = sphi 0, %s124
      %s125 = sphi 0, %s122
      %s126 = sphi 0, %s125
      %s142 = sphi 0, %s126
    $region4: #{tpu_custom_call.1} parent=1 // loop_header_branch
      %19 = sbr.rel (%p17) target = $region8
    $region5: #{tpu_custom_call.1} parent=1 // loop_body
      %s21 = ssub.s32 %s16, 1
      %s22 = ssub.s32 %s16, 2
      %s32 = sadd.s32 1, %s25
      %p33 = scmp.ge.s32.totalorder %s32, 1
      %s34 = scalar_select %p33, 0, %s32
      %s35 = sadd.s32 1, %s24
      %s36 = scalar_select %p33, %s35, %s24
      %p37 = scmp.ge.s32.totalorder %s36, 1
      %s38 = scalar_select %p37, 0, %s36
      %s39 = sadd.s32 1, %s23
      %s40 = scalar_select %p37, %s39, %s23
      %p41 = scmp.ge.s32.totalorder %s40, 2
      %s42 = scalar_select %p41, 0, %s40
      %s43 = sadd.s32 %s23, %s24
      %s44 = sadd.s32 %s42, %s38
      %s45 = ssub.s32 %s43, %s44
      %s46 = ssub.s32 %s25, %s34
      %s47 = sor.u32 %s45, %s46
      %p48 = scmp.eq.s32.totalorder %s47, 0
      %s50 = sadd.s32 %s49, 1
      %s51 = scalar_select %p48, %s49, %s50
      %p54 = pneg %p48
      %p55 = scmp.eq.s32.totalorder %s16, 1
      %p56 = por %p54, %p55
      %p57 = scmp.ne.s32.totalorder %s49, %s52
      %p58 = scmp.eq.s32.totalorder %s16, 0
      %p59 = por %p57, %p58
      %p60 = scmp.ne.s32.totalorder %s49, %s52
      %p61 = scmp.eq.s32.totalorder %s21, 1
      %p62 = por %p60, %p61
      %p63 = scmp.ne.s32.totalorder %s52, %s53
      %p64 = scmp.eq.s32.totalorder %s21, 0
      %p65 = por %p63, %p64
      %p66 = scmp.ne.s32.totalorder %s52, %s53
      %p67 = scmp.eq.s32.totalorder %s22, 1
      %p68 = por %p66, %p67
      %p70 = scmp.ne.s32.totalorder %s53, %s69
      %p71 = scmp.eq.s32.totalorder %s22, 0
      %p72 = por %p70, %p71
      %s74 = sadd.s32 %s73, 1
      %p77 = scmp.eq.s32.totalorder %s16, 1
      %p78 = scmp.ne.s32.totalorder %s73, %s75
      %p79 = scmp.eq.s32.totalorder %s16, 0
      %p80 = por %p78, %p79
      %p81 = scmp.ne.s32.totalorder %s73, %s75
      %p82 = scmp.eq.s32.totalorder %s21, 1
      %p83 = por %p81, %p82
      %p84 = scmp.ne.s32.totalorder %s75, %s76
      %p85 = scmp.eq.s32.totalorder %s21, 0
      %p86 = por %p84, %p85
      %p87 = scmp.ne.s32.totalorder %s75, %s76
      %p88 = scmp.eq.s32.totalorder %s22, 1
      %p89 = por %p87, %p88
      %p91 = scmp.ne.s32.totalorder %s76, %s90
      %p92 = scmp.eq.s32.totalorder %s22, 0
      %p93 = por %p91, %p92
      %s94 = ssub.s32 %s23, %s42
      %p95 = scmp.eq.s32.totalorder %s94, 0
      %s97 = sadd.s32 %s96, 1
      %s98 = scalar_select %p95, %s96, %s97
      %p101 = pneg %p95
      %p102 = scmp.eq.s32.totalorder %s16, 1
      %p103 = por %p101, %p102
      %p104 = scmp.ne.s32.totalorder %s96, %s99
      %p105 = scmp.eq.s32.totalorder %s16, 0
      %p106 = por %p104, %p105
      %p107 = scmp.ne.s32.totalorder %s96, %s99
      %p108 = scmp.eq.s32.totalorder %s21, 1
      %p109 = por %p107, %p108
      %p110 = scmp.ne.s32.totalorder %s99, %s100
      %p111 = scmp.eq.s32.totalorder %s21, 0
      %p112 = por %p110, %p111
      %p113 = scmp.ne.s32.totalorder %s99, %s100
      %p114 = scmp.eq.s32.totalorder %s22, 1
      %p115 = por %p113, %p114
      %p117 = scmp.ne.s32.totalorder %s100, %s116
      %p118 = scmp.eq.s32.totalorder %s22, 0
      %p119 = por %p117, %p118
      %s120 = ssub.s32 %s23, %s42
      %p121 = scmp.eq.s32.totalorder %s120, 0
      %s123 = sadd.s32 %s122, 1
      %s124 = scalar_select %p121, %s122, %s123
      %p127 = pneg %p121
      %p128 = scmp.eq.s32.totalorder %s16, 1
      %p129 = por %p127, %p128
      %p130 = scmp.ne.s32.totalorder %s122, %s125
      %p131 = scmp.eq.s32.totalorder %s16, 0
      %p132 = por %p130, %p131
      %p133 = scmp.ne.s32.totalorder %s122, %s125
      %p134 = scmp.eq.s32.totalorder %s21, 1
      %p135 = por %p133, %p134
      %p136 = scmp.ne.s32.totalorder %s125, %s126
      %p137 = scmp.eq.s32.totalorder %s21, 0
      %p138 = por %p136, %p137
      %p139 = scmp.ne.s32.totalorder %s125, %s126
      %p140 = scmp.eq.s32.totalorder %s22, 1
      %p141 = por %p139, %p140
      %p143 = scmp.ne.s32.totalorder %s126, %s142
      %p144 = scmp.eq.s32.totalorder %s22, 0
      %p145 = por %p143, %p144
      %p146 = scmp.le.s32.totalorder 1, %s16
      %p147 = scmp.lt.s32.totalorder %s16, 3
      %p148 = pnand %p146, %p147
      %p149 = pneg %p148
      // Predicated region
      $region9: #{tpu_custom_call.1} parent=5 // pred_check
        _
      $region10: #{tpu_custom_call.1} parent=5 // pred_check_branch
        %151 = sbr.rel (%p148) target = $region12
      $region11: #{tpu_custom_call.1} parent=5 // pred_region
        %s152 = ssub.s32 %s16, 1
        // Predicated region
        $region13: #{tpu_custom_call.1} parent=11 // pred_check
          %p153 = pneg %p86
        $region14: #{tpu_custom_call.1} parent=11 // pred_check_branch
          %155 = sbr.rel (%p153) target = $region16
        $region15: #{tpu_custom_call.1} parent=11 // pred_region
          _
        $region16: #{tpu_custom_call.1} parent=11 // pred_fallthru
          _
      $region12: #{tpu_custom_call.1} parent=5 // pred_fallthru
        _
      %p156 = scmp.lt.s32.totalorder %s16, 2
      // Predicated region
      $region17: #{tpu_custom_call.1} parent=5 // pred_check
        %p157 = pneg %p156
      $region18: #{tpu_custom_call.1} parent=5 // pred_check_branch
        %159 = sbr.rel (%p157) target = $region20
      $region19: #{tpu_custom_call.1} parent=5 // pred_region
        // Predicated region
        $region21: #{tpu_custom_call.1} parent=19 // pred_check
          %p160 = pneg %p59
        $region22: #{tpu_custom_call.1} parent=19 // pred_check_branch
          %162 = sbr.rel (%p160) target = $region24
        $region23: #{tpu_custom_call.1} parent=19 // pred_region
          %s163 = sand.u32 %s49, 1
          %s164 = scalar_lea.sflag [#allocation3], %s163
          %s165 = sand.u32 %s49, 1
          %s166 = smul.addr %s165, 4
          %s167 = scalar_lea.vmem [#allocation2], %s166
          %s168 = sadd.s32 %s23, %s24
          %s170 = ssub.s32 64, 64
          %171 = vsyncadd %s164, %s170
          %s172 = sadd.s32 %s25, %s168
          %s173 = smul.addr %s172, 64
          %s174 = scalar_lea.hbm %s0, %s173
          %s176 = sshll.u32 %s167, 4
          %s177 = int_to_ptr.vmem [resolvable:$true] %s176
          %179 = dma.hbm_to_vmem [thread:$0]  %s174, 64, %s177, %s164
        $region24: #{tpu_custom_call.1} parent=19 // pred_fallthru
          _
      $region20: #{tpu_custom_call.1} parent=5 // pred_fallthru
        _
      %p180 = scmp.le.s32.totalorder 1, %s16
      %p181 = scmp.lt.s32.totalorder %s16, 3
      %p182 = pnand %p180, %p181
      %p183 = pneg %p182
      // Predicated region
      $region25: #{tpu_custom_call.1} parent=5 // pred_check
        _
      $region26: #{tpu_custom_call.1} parent=5 // pred_check_branch
        %185 = sbr.rel (%p182) target = $region28
      $region27: #{tpu_custom_call.1} parent=5 // pred_region
        %s186 = ssub.s32 %s16, 1
        %s187 = sand.u32 %s52, 1
        %s188 = scalar_lea.sflag [#allocation3], %s187
        %s189 = sand.u32 %s52, 1
        %s190 = smul.addr %s189, 4
        %s191 = scalar_lea.vmem [#allocation2], %s190
        // Predicated region
        $region29: #{tpu_custom_call.1} parent=27 // pred_check
          %p192 = pneg %p65
        $region30: #{tpu_custom_call.1} parent=27 // pred_check_branch
          %194 = sbr.rel (%p192) target = $region32
        $region31: #{tpu_custom_call.1} parent=27 // pred_region
          %195 = dma.done %s188, 64
        $region32: #{tpu_custom_call.1} parent=27 // pred_fallthru
          _
        %s196 = sand.u32 %s52, 1
        %s197 = scalar_lea.sflag [#allocation3], %s196
        %s198 = sand.u32 %s52, 1
        %s199 = smul.addr %s198, 4
        %s200 = scalar_lea.vmem [#allocation2], %s199
        %p201 = pneg %p65
        %p202 = pneg %p62
        %p203 = pneg %p86
        %p204 = pneg %p83
        %p205 = pneg %p112
        %p206 = pneg %p109
        %s207 = sand.u32 %s99, 1
        %s208 = scalar_lea.sflag [#allocation4], %s207
        %s209 = sand.u32 %s99, 1
        %s210 = smul.addr %s209, 4
        %s211 = scalar_lea.vmem [#allocation5], %s210
        %p212 = pneg %p138
        %p213 = pneg %p135
        %p214 = scmp.lt.s32.totalorder %s26, 1
        %s215 = scalar_select %p214, %s26, 1
        %s216 = smul.addr %s215, 4
        %s217 = scalar_lea.vmem %s3, %s216
        %s218 = sadd.s32 %s26, %s27
        %p219 = scmp.lt.s32.totalorder %s26, 1
        %s220 = scalar_select %p219, %s26, 1
        %s221 = smul.addr %s220, 4
        %s222 = scalar_lea.vmem %s3, %s221
        %p223 = scmp.eq.s32.totalorder %s27, 0
        %p224 = scmp.eq.s32.totalorder %s28, 0
        %p225 = pnand %p223, %p224
        %p226 = pneg %p225
        // Predicated region
        $region33: #{tpu_custom_call.1} parent=27 // pred_check
          _
        $region34: #{tpu_custom_call.1} parent=27 // pred_check_branch
          %228 = sbr.rel (%p225) target = $region36
        $region35: #{tpu_custom_call.1} parent=27 // pred_region
          %vm229 = vcmask 27648
          %230 = vst.msk [vmem:[%s211] sm:$0xf] %vm229, 0.0
          %vm231 = vcmask 3072
          %232 = vst.msk [vmem:[%s222] sm:$0xf] %vm231, 0.0
        $region36: #{tpu_custom_call.1} parent=27 // pred_fallthru
          _
        %v233 = vld [vmem:[%s191] sm:$0xf]
        %v234 = vld [vmem:[%s1] sm:$0xf]
        %236 = vset.pattern.permute.xlu0 0
        %237 = vperm.xlu0 %236, %v234
        %v238 = vpop.permute.xlu0 %237
        %v240 = vsub.f32 %v233, %v238
        %v241 = vld [vmem:[%s211] sm:$0xf]
        %vm242 = vcmask 130048
        %v244 = vsel %vm242, %v240, 0
        %246 = vmatprep.subr.mxu0 0.0
        %247 = vmatpush1.xpose.msra.mxu0 0.0
        %248 = vmatprep.subr.mxu0 0.0
        %249 = vmatpush1.xpose.msra.mxu0 0.0
        %250 = vmatprep.subr.mxu0 0.0
        %251 = vmatpush1.xpose.msra.mxu0 0.0
        %252 = vmatprep.subr.mxu0 0.0
        %253 = vmatpush1.xpose.msra.mxu0 0.0
        %254 = vmatprep.subr.mxu0 0.0
        %255 = vmatpush1.xpose.msra.mxu0 0.0
        %256 = vmatprep.subr.mxu0 0.0
        %257 = vmatpush1.xpose.msra.mxu0 0.0
        %258 = vmatprep.subr.mxu0 0.0
        %259 = vmatpush1.xpose.msra.mxu0 0.0
        %260 = vmatprep.subr.mxu0 0.0
        %261 = vmatpush1.xpose.msra.mxu0 0.0
        %262 = vmatprep.subr.mxu0 0.0
        %263 = vmatpush1.xpose.msra.mxu0 0.0
        %264 = vmatprep.subr.mxu0 0.0
        %265 = vmatpush1.xpose.msra.mxu0 0.0
        %266 = vmatprep.subr.mxu0 0.0
        %267 = vmatpush1.xpose.msra.mxu0 0.0
        %268 = vmatprep.subr.mxu0 0.0
        %269 = vmatpush1.xpose.msra.mxu0 0.0
        %270 = vmatprep.subr.mxu0 0.0
        %271 = vmatpush1.xpose.msra.mxu0 0.0
        %272 = vmatprep.subr.mxu0 0.0
        %273 = vmatpush1.xpose.msra.mxu0 0.0
        %274 = vmatprep.subr.mxu0 0.0
        %275 = vmatpush1.xpose.msra.mxu0 0.0
        %276 = vmatprep.subr.mxu0 0.0
        %277 = vmatpush1.xpose.msra.mxu0 %v244
        %278 = vmatprep.subr.mxu0 0.0
        %279 = vmatpush2.xpose.msra.mxu0 0.0
        %280 = vmatprep.subr.mxu0 0.0
        %281 = vmatpush2.xpose.msra.mxu0 0.0
        %282 = vmatprep.subr.mxu0 0.0
        %283 = vmatpush2.xpose.msra.mxu0 0.0
        %284 = vmatprep.subr.mxu0 0.0
        %285 = vmatpush2.xpose.msra.mxu0 0.0
        %286 = vmatprep.subr.mxu0 0.0
        %287 = vmatpush2.xpose.msra.mxu0 0.0
        %288 = vmatprep.subr.mxu0 0.0
        %289 = vmatpush2.xpose.msra.mxu0 0.0
        %290 = vmatprep.subr.mxu0 0.0
        %291 = vmatpush2.xpose.msra.mxu0 0.0
        %292 = vmatprep.subr.mxu0 0.0
        %293 = vmatpush2.xpose.msra.mxu0 0.0
        %294 = vmatprep.subr.mxu0 0.0
        %295 = vmatpush2.xpose.msra.mxu0 0.0
        %296 = vmatprep.subr.mxu0 0.0
        %297 = vmatpush2.xpose.msra.mxu0 0.0
        %298 = vmatprep.subr.mxu0 0.0
        %299 = vmatpush2.xpose.msra.mxu0 0.0
        %300 = vmatprep.subr.mxu0 0.0
        %301 = vmatpush2.xpose.msra.mxu0 0.0
        %302 = vmatprep.subr.mxu0 0.0
        %303 = vmatpush2.xpose.msra.mxu0 0.0
        %304 = vmatprep.subr.mxu0 0.0
        %305 = vmatpush2.xpose.msra.mxu0 0.0
        %306 = vmatprep.subr.mxu0 0.0
        %307 = vmatpush2.xpose.msra.mxu0 0.0
        %308 = vmatprep.subr.mxu0 0.0
        %309 = vmatpush2.xpose.msra.mxu0 0.0
        %310 = vmatprep.mubr.f32.mxu0 0.0
        %311 = vmatmul.mubr.f32.gmra.mxu0 %v244
        %v312 = vpop.f32.mrf.mxu0
        %v313 = vadd.f32 0.0, %v312
        %v314 = vpop.f32.mrf.mxu0
        %315 = vdwg.mxu0
        %v316 = vadd.f32 %v241, %v313
        %vm317 = vcmask 27648
        %318 = vst.msk [vmem:[%s211] sm:$0xf] %vm317, %v316
        %v319 = vld [vmem:[%s222] sm:$0xf]
        %vm320 = vcmask 125952
        %v321 = vsel %vm320, %v240, 0.0
        %322 = vadd.xlane.f32.xlu0 %v321
        %v323 = vpop.xlane.xlu0 %322
        %v324 = vadd.f32 %v319, %v323
        %vm325 = vcmask 3072
        %326 = vst.msk [vmem:[%s222] sm:$0xf] %vm325, %v324
        %s327 = sand.u32 %s99, 1
        %s328 = scalar_lea.sflag [#allocation4], %s327
        %s329 = sand.u32 %s99, 1
        %s330 = smul.addr %s329, 4
        %s331 = scalar_lea.vmem [#allocation5], %s330
        %p332 = scmp.lt.s32.totalorder %s26, 1
        %s333 = scalar_select %p332, %s26, 1
        %s334 = smul.addr %s333, 4
        %s335 = scalar_lea.vmem %s3, %s334
        // Predicated region
        $region37: #{tpu_custom_call.1} parent=27 // pred_check
          %p336 = pneg %p109
        $region38: #{tpu_custom_call.1} parent=27 // pred_check_branch
          %338 = sbr.rel (%p336) target = $region40
        $region39: #{tpu_custom_call.1} parent=27 // pred_region
          %s340 = ssub.s32 64, 64
          %341 = vsyncadd %s328, %s340
          %s342 = smul.addr %s26, 64
          %s343 = scalar_lea.hbm %s2, %s342
          %s345 = sshll.u32 %s331, 4
          %s346 = int_to_ptr.vmem [resolvable:$true] %s345
          %348 = dma.vmem_to_hbm [thread:$0]  %s346, 64, %s343, %s328
        $region40: #{tpu_custom_call.1} parent=27 // pred_fallthru
          _
        // Predicated region
        $region41: #{tpu_custom_call.1} parent=27 // pred_check
          %p349 = pneg %p135
        $region42: #{tpu_custom_call.1} parent=27 // pred_check_branch
          %351 = sbr.rel (%p349) target = $region44
        $region43: #{tpu_custom_call.1} parent=27 // pred_region
          _
        $region44: #{tpu_custom_call.1} parent=27 // pred_fallthru
          _
      $region28: #{tpu_custom_call.1} parent=5 // pred_fallthru
        _
      %p352 = scmp.le.s32.totalorder 2, %s16
      // Predicated region
      $region45: #{tpu_custom_call.1} parent=5 // pred_check
        %p353 = pneg %p352
      $region46: #{tpu_custom_call.1} parent=5 // pred_check_branch
        %355 = sbr.rel (%p353) target = $region48
      $region47: #{tpu_custom_call.1} parent=5 // pred_region
        %s356 = ssub.s32 %s16, 2
        // Predicated region
        $region49: #{tpu_custom_call.1} parent=47 // pred_check
          %p357 = pneg %p115
        $region50: #{tpu_custom_call.1} parent=47 // pred_check_branch
          %359 = sbr.rel (%p357) target = $region52
        $region51: #{tpu_custom_call.1} parent=47 // pred_region
          %s360 = sand.u32 %s100, 1
          %s361 = scalar_lea.sflag [#allocation4], %s360
          %s362 = sand.u32 %s100, 1
          %s363 = smul.addr %s362, 4
          %s364 = scalar_lea.vmem [#allocation5], %s363
          %365 = dma.done %s361, 64
        $region52: #{tpu_custom_call.1} parent=47 // pred_fallthru
          _
        // Predicated region
        $region53: #{tpu_custom_call.1} parent=47 // pred_check
          %p366 = pneg %p141
        $region54: #{tpu_custom_call.1} parent=47 // pred_check_branch
          %368 = sbr.rel (%p366) target = $region56
        $region55: #{tpu_custom_call.1} parent=47 // pred_region
          %p369 = scmp.lt.s32.totalorder %s29, 1
          %s370 = scalar_select %p369, %s29, 1
          %s371 = smul.addr %s370, 4
          %s372 = scalar_lea.vmem %s3, %s371
        $region56: #{tpu_custom_call.1} parent=47 // pred_fallthru
          _
      $region48: #{tpu_custom_call.1} parent=5 // pred_fallthru
        _
    $region6: #{tpu_custom_call.1} parent=1 // loop_footer
      %s20 = sadd.s32 1, %s16
    $region7: #{tpu_custom_call.1} parent=1 // loop_footer_branch
      %15 = sbr.rel target = $region3
    $region8: #{tpu_custom_call.1} parent=1 // loop_exit
      _
    %373 = vsyncpa [#allocation3], 1
    %s374 = scalar_lea.sflag [#allocation3], 1
    %375 = vsyncpa %s374, 1
    %376 = vsyncpa [#allocation4], 1
    %s377 = scalar_lea.sflag [#allocation4], 1
    %378 = vsyncpa %s377, 1

</llo_original>
